<compile_context>
chip_gen: v7x
topology: tpu7x:2x2x1
jax: 0.10.0
libtpu: 0.0.40
codegen_flags: <defaults>
</compile_context>

<pallas_src>
import functools
import math

import jax
import jax.numpy as jnp
from jax.experimental import pallas as pl
from jax.experimental.pallas import tpu as pltpu


def _round_up(x, m):
    return (x + m - 1) // m * m


def _pow2_floor(n):
    p = 1
    while p * 2 <= n:
        p *= 2
    return p


def _chip_budgets():
    """Return (per-stream tile bytes, vmem_limit_bytes). Defaults are v7x-safe (64 MiB VMEM)."""
    tile, limit = 2 * 1024 * 1024, 40 * 1024 * 1024
    try:
        cap = getattr(pltpu.get_tpu_info(), "vmem_capacity_bytes", 0) or 0
        if cap >= 96 * 1024 * 1024:          # v5e / v6e: 128 MiB VMEM -> roomier tiles & limit
            tile, limit = 4 * 1024 * 1024, 64 * 1024 * 1024
    except Exception:
        pass
    return tile, limit


# ---------------------------------------------------------------------------
# Kernels
# ---------------------------------------------------------------------------
def _acc_kernel_whole_d(x_ref, t_ref, o_ref, *, n_chunks, chunk_groups):
    """Whole-D path. x_ref/t_ref: (S, 128, D) native dtype; o_ref: (S, 128) f32.

    Body is chunked over sublane-groups (lax.fori_loop, fully unrolled) so the f32
    upcast temporaries (x, t, e) stay roughly vreg-file sized instead of spilling
    a whole multi-MiB tile's worth of f32 into VMEM.
    """

    def body(s, carry):
        idx = s * chunk_groups
        if chunk_groups > 1:
            idx = pl.multiple_of(idx, chunk_groups)
        x = x_ref[pl.ds(idx, chunk_groups)].astype(jnp.float32)   # (CG, 128, D)
        t = t_ref[pl.ds(idx, chunk_groups)].astype(jnp.float32)
        m = jnp.max(x, axis=-1, keepdims=True)
        e = jnp.exp(x - m)                                        # EUP
        num = jnp.sum(e * t, axis=-1)                             # (CG, 128), XLU reduce
        den = jnp.sum(e, axis=-1)
        r = pl.reciprocal(den, approx=True)                       # EUP rcp (idle slot) ...
        r = r * (2.0 - den * r)                                   # ... + one Newton step (cheap, keeps accuracy)
        o_ref[pl.ds(idx, chunk_groups), :] = (num * r).astype(o_ref.dtype)
        return carry

    jax.lax.fori_loop(0, n_chunks, body, 0, unroll=True)


def _acc_kernel_d_tiled(x_ref, t_ref, o_ref, m_ref, num_ref, den_ref, *,
                        d_total, d_tile, n_groups):
    """Large-D path: online-softmax accumulator tiled over D (second, 'arbitrary' grid axis).

    x_ref/t_ref: (S, 128, Dt) native dtype; o_ref: (S, 128) f32 (written on the last k);
    m/num/den: (S, 128) f32 VMEM scratch, re-initialised at k == 0 for every row block.
    """
    k = pl.program_id(1)

    @pl.when(k == 0)
    def _init():
        m_ref[...] = jnp.full(m_ref.shape, -jnp.inf, m_ref.dtype)
        num_ref[...] = jnp.zeros(num_ref.shape, num_ref.dtype)
        den_ref[...] = jnp.zeros(den_ref.shape, den_ref.dtype)

    # Mask the ragged tail of the last D-block (those lanes hold OOB garbage).
    col = k * d_tile + jax.lax.broadcasted_iota(jnp.int32, (1, d_tile), 1)
    valid = col < d_total

    def body(s, carry):
        x = x_ref[s].astype(jnp.float32)                          # (128, Dt)
        t = t_ref[s].astype(jnp.float32)
        x = jnp.where(valid, x, -jnp.inf)
        t = jnp.where(valid, t, 0.0)
        m_prev = m_ref[s]                                         # (128,)
        m_new = jnp.maximum(m_prev, jnp.max(x, axis=-1))
        alpha = jnp.exp(m_prev - m_new)                           # exp(-inf) = 0 on k == 0
        e = jnp.exp(x - m_new[:, None])
        num_ref[s, :] = alpha * num_ref[s] + jnp.sum(e * t, axis=-1)
        den_ref[s, :] = alpha * den_ref[s] + jnp.sum(e, axis=-1)
        m_ref[s, :] = m_new
        return carry

    jax.lax.fori_loop(0, n_groups, body, 0, unroll=True)

    @pl.when(k == pl.num_programs(1) - 1)
    def _finalize():
        den = den_ref[...]
        r = pl.reciprocal(den, approx=True)
        r = r * (2.0 - den * r)
        o_ref[...] = (num_ref[...] * r).astype(o_ref.dtype)


# ---------------------------------------------------------------------------
# Tiling plan
# ---------------------------------------------------------------------------
def _plan_rows_whole_d(G, per_group, tile_bytes):
    """Row-tile (in 128-row sublane-groups) for the whole-D path."""
    if G <= 8:
        return G                                  # single block; tile fits by construction
    fit = max(8, tile_bytes // per_group)         # groups that fit the per-stream tile budget
    # >= 4 (>= 2) parallel grid steps: v7x megacore split + DMA/compute overlap everywhere.
    cap = G // 4 if G >= 32 else G // 2
    S = min(fit, cap, 64)                         # 64 caps the in-kernel unrolled loop
    return max(8, (S // 8) * 8)                   # output block (S, 128) needs S % 8 == 0


def _make_in_spec(block_shape, index_map, buffers):
    if buffers > 2:
        # Deeper input buffering hides DMA issue latency (most useful on v7x).
        return pl.BlockSpec(block_shape, index_map, pipeline_mode=pl.Buffered(buffers))
    return pl.BlockSpec(block_shape, index_map)


# ---------------------------------------------------------------------------
# Wrapper
# ---------------------------------------------------------------------------
def metrics_forward(inputs, targets, type_loss='acc'):
    """Pallas port of metrics.forward.

    type_loss='acc': returns sum(softmax(inputs, -1) * targets, -1), shape inputs.shape[:-1].
    """
    if type_loss == 'auc':
        # TODO(synk): 'auc' (sklearn.roc_auc_score, a dataset-level rank statistic) has no
        # clean Pallas equivalent; not implemented.
        raise NotImplementedError("type_loss='auc' is not supported by the Pallas port")
    if type_loss != 'acc':
        raise ValueError(f"unknown type_loss: {type_loss}")

    inputs = jnp.asarray(inputs)
    targets = jnp.asarray(targets)
    if targets.shape != inputs.shape:
        # TODO(synk): express broadcasting with a pinned-index BlockSpec for targets instead
        # of materializing the broadcast in HBM (extra read+write on a memory-bound kernel).
        targets = jnp.broadcast_to(targets, inputs.shape)

    shape = inputs.shape
    D = shape[-1]
    lead = shape[:-1]
    rows = math.prod(lead)                         # empty tuple -> 1 (handles 1-D inputs)

    if D == 0:
        raise ValueError("softmax axis must be non-empty")
    if rows == 0:
        return jnp.zeros(lead, jnp.float32)        # zero-sized leading dims: nothing to do

    itemsize = max(jnp.dtype(inputs.dtype).itemsize, jnp.dtype(targets.dtype).itemsize)
    tile_bytes, vmem_limit = _chip_budgets()

    rows_128 = _round_up(rows, 128)
    G = rows_128 // 128

    x2 = inputs.reshape(rows, D)
    t2 = targets.reshape(rows, D)
    if rows_128 != rows:
        # Pad only to the next multiple of 128 (needed for the (G, 128, D) fold); the
        # common case (rows % 128 == 0) does no host-side copy at all.
        pad = rows_128 - rows
        x2 = jnp.pad(x2, ((0, pad), (0, 0)))
        t2 = jnp.pad(t2, ((0, pad), (0, 0)))
    x3 = x2.reshape(G, 128, D)                     # contiguous reshape: no data movement
    t3 = t2.reshape(G, 128, D)

    per_group = 128 * D * itemsize                 # bytes per (128, D) sublane-group
    S_min = G if G <= 8 else 8
    out_shape = jax.ShapeDtypeStruct((G, 128), jnp.float32)

    if S_min * per_group <= tile_bytes:
        # ---- path A: whole D per block -------------------------------------------------
        S = _plan_rows_whole_d(G, per_group, tile_bytes)
        # Sublane-group chunk so per-iteration f32 temps stay ~256 KiB (one vreg file).
        CG = math.gcd(_pow2_floor(max(1, min(8, 512 // max(D, 1)))), S)
        kernel = functools.partial(_acc_kernel_whole_d, n_chunks=S // CG, chunk_groups=CG)
        grid = (pl.cdiv(G, S),)
        in_block = (S, 128, D)
        in_imap = lambda i: (i, 0, 0)
        out_spec = pl.BlockSpec((S, 128), lambda i: (i, 0))
        scratch = []
        dims = ("parallel",)
    else:
        # ---- path B: D-tiled online softmax (large D) ----------------------------------
        S = S_min
        dt_budget = tile_bytes // (S * 128 * itemsize)
        Dt = max(128, (min(dt_budget, 4096) // 128) * 128)
        kernel = functools.partial(_acc_kernel_d_tiled, d_total=D, d_tile=Dt, n_groups=S)
        grid = (pl.cdiv(G, S), pl.cdiv(D, Dt))     # reduction (D) axis last, 'arbitrary'
        in_block = (S, 128, Dt)
        in_imap = lambda i, k: (i, 0, k)
        out_spec = pl.BlockSpec((S, 128), lambda i, k: (i, 0))
        scratch = [pltpu.VMEM((S, 128), jnp.float32) for _ in range(3)]   # m, num, den
        dims = ("parallel", "arbitrary")

    def _run(input_buffers):
        in_spec = _make_in_spec(in_block, in_imap, input_buffers)
        return pl.pallas_call(
            kernel,
            out_shape=out_shape,
            grid_spec=pltpu.PrefetchScalarGridSpec(
                num_scalar_prefetch=0,
                grid=grid,
                in_specs=[in_spec, in_spec],
                out_specs=out_spec,
                scratch_shapes=scratch,
            ),
            compiler_params=pltpu.CompilerParams(
                dimension_semantics=dims,
                vmem_limit_bytes=vmem_limit,
            ),
        )(x3, t3)

    try:
        out = _run(3)          # triple-buffered inputs (hides DMA issue latency, v7x)
    except Exception:          # pl.Buffered/pipeline_mode unsupported -> default 2-deep
        out = _run(2)

    out = out.reshape(rows_128)[:rows]
    return out.reshape(lead)


# ---------------------------------------------------------------------------
# Self-test
# ---------------------------------------------------------------------------
def _reference(inputs, targets):
    x = jnp.asarray(inputs).astype(jnp.float32)
    t = jnp.asarray(targets).astype(jnp.float32)
    return jnp.sum(jax.nn.softmax(x, axis=-1) * t, axis=-1)


if __name__ == "__main__":
    key = jax.random.PRNGKey(0)
    k = jax.random.split(key, 10)
    ok = True
    cases = []

    # 1) typical classification-shaped input: (batch=2, heads=4, seq=8, classes=32)
    logits = jax.random.normal(k[0], (2, 4, 8, 32), jnp.float32)
    labels = jax.nn.one_hot(jax.random.randint(k[1], (2, 4, 8), 0, 32), 32, dtype=jnp.float32)
    cases.append(("4d_f32", logits, labels))

    # 2) bf16 inputs with odd dims (row padding + in-kernel upcast path)
    logits2 = jax.random.normal(k[2], (3, 5, 33), jnp.float32).astype(jnp.bfloat16)
    labels2 = jax.nn.softmax(jax.random.normal(k[3], (3, 5, 33), jnp.float32), axis=-1).astype(jnp.bfloat16)
    cases.append(("3d_bf16", logits2, labels2))

    # 3) 1-D input (rows == 1)
    logits3 = jax.random.normal(k[4], (257,), jnp.float32)
    labels3 = jax.nn.one_hot(jax.random.randint(k[5], (), 0, 257), 257, dtype=jnp.float32)
    cases.append(("1d_f32", logits3, labels3))

    # 4) multi-step parallel grid + partial last row block + chunked body (rows=2176, D=128)
    logits4 = jax.random.normal(k[6], (2176, 128), jnp.float32)
    labels4 = jax.nn.one_hot(jax.random.randint(k[7], (2176,), 0, 128), 128, dtype=jnp.float32)
    cases.append(("2d_midrows_f32", logits4, labels4))

    # 5) large last axis -> D-tiled online-softmax path (ragged D tail + row padding)
    logits5 = jax.random.normal(k[8], (96, 8300), jnp.float32)
    labels5 = jax.nn.one_hot(jax.random.randint(k[9], (96,), 0, 8300), 8300, dtype=jnp.float32)
    cases.append(("2d_largeD_f32", logits5, labels5))

    for name, x, t in cases:
        out = metrics_forward(x, t, type_loss='acc')
        out = jax.block_until_ready(out)
        ref = _reference(x, t)
        if out.shape != ref.shape:
            ok = False
            print(f"MISMATCH case={name} shape {out.shape} vs {ref.shape}")
        elif not jnp.allclose(out, ref, atol=1e-4, rtol=1e-4):
            ok = False
            print(f"MISMATCH case={name} max_err={float(jnp.max(jnp.abs(out - ref)))}")

    if ok:
        print("KERNEL_OK")
</pallas_src>

<mosaic_0001>
module attributes {stable_mosaic.version = 11 : i64} {
  func.func @_acc_kernel_whole_d(%arg0: i32, %arg1: memref<1x128x32xf32, #tpu.memory_space<vmem>>, %arg2: memref<1x128x32xf32, #tpu.memory_space<vmem>>, %arg3: memref<1x128xf32, #tpu.memory_space<vmem>>) attributes {dimension_semantics = [#tpu.dimension_semantics<parallel>], iteration_bounds = array<i64: 1>, scalar_prefetch = 0 : i64, scratch_operands = 0 : i64, tpu.core_type = #tpu.core_type<tc>, window_params = [{transform_indices = @transform_0, window_bounds = array<i64: 1, 128, 32>}, {transform_indices = @transform_1, window_bounds = array<i64: 1, 128, 32>}, {transform_indices = @transform_2, window_bounds = array<i64: 1, 128>}]} {
    %c0_i32 = arith.constant 0 : i32
    %c1_i32 = arith.constant 1 : i32
    %0 = arith.muli %c0_i32, %c1_i32 : i32
    %1 = arith.index_cast %0 : i32 to index
    %c0 = arith.constant 0 : index
    %c0_0 = arith.constant 0 : index
    %2 = vector.load %arg1[%1, %c0, %c0_0] : memref<1x128x32xf32, #tpu.memory_space<vmem>>, vector<1x128x32xf32>
    %3 = arith.index_cast %0 : i32 to index
    %c0_1 = arith.constant 0 : index
    %c0_2 = arith.constant 0 : index
    %4 = vector.load %arg2[%3, %c0_1, %c0_2] : memref<1x128x32xf32, #tpu.memory_space<vmem>>, vector<1x128x32xf32>
    %cst = arith.constant dense<0xFF800000> : vector<1x128xf32>
    %5 = vector.multi_reduction <maximumf>, %2, %cst [2] : vector<1x128x32xf32> to vector<1x128xf32>
    %6 = vector.shape_cast %5 : vector<1x128xf32> to vector<1x128x1xf32>
    %7 = vector.broadcast %6 : vector<1x128x1xf32> to vector<1x128x32xf32>
    %8 = arith.subf %2, %7 : vector<1x128x32xf32>
    %9 = math.exp %8 : vector<1x128x32xf32>
    %10 = arith.mulf %9, %4 : vector<1x128x32xf32>
    %cst_3 = arith.constant dense<0.000000e+00> : vector<1x128xf32>
    %11 = vector.multi_reduction <add>, %10, %cst_3 [2] : vector<1x128x32xf32> to vector<1x128xf32>
    %cst_4 = arith.constant dense<0.000000e+00> : vector<1x128xf32>
    %12 = vector.multi_reduction <add>, %9, %cst_4 [2] : vector<1x128x32xf32> to vector<1x128xf32>
    %13 = tpu.reciprocal %12 {approx = true} : vector<1x128xf32> -> vector<1x128xf32>
    %14 = arith.mulf %12, %13 : vector<1x128xf32>
    %cst_5 = arith.constant 2.000000e+00 : f32
    %15 = vector.broadcast %cst_5 : f32 to vector<1x128xf32>
    %16 = arith.subf %15, %14 : vector<1x128xf32>
    %17 = arith.mulf %13, %16 : vector<1x128xf32>
    %18 = arith.mulf %11, %17 : vector<1x128xf32>
    %19 = arith.index_cast %0 : i32 to index
    %c0_6 = arith.constant 0 : index
    %20 = vector.load %arg3[%19, %c0_6] : memref<1x128xf32, #tpu.memory_space<vmem>>, vector<1x128xf32>
    tpu.vector_store %arg3[%19, %c0_6], %18 {strides = array<i32>} : memref<1x128xf32, #tpu.memory_space<vmem>>, vector<1x128xf32>,
    %c1_i32_7 = arith.constant 1 : i32
    return
  }
  func.func @transform_0(%arg0: i32) -> (i32, i32, i32) {
    %c0_i32 = arith.constant 0 : i32
    %c0_i32_0 = arith.constant 0 : i32
    %c0_i32_1 = arith.constant 0 : i32
    return %arg0, %c0_i32, %c0_i32_0 : i32, i32, i32
  }
  func.func @transform_1(%arg0: i32) -> (i32, i32, i32) {
    %c0_i32 = arith.constant 0 : i32
    %c0_i32_0 = arith.constant 0 : i32
    %c0_i32_1 = arith.constant 0 : i32
    return %arg0, %c0_i32, %c0_i32_0 : i32, i32, i32
  }
  func.func @transform_2(%arg0: i32) -> (i32, i32) {
    %c0_i32 = arith.constant 0 : i32
    %c0_i32_0 = arith.constant 0 : i32
    return %arg0, %c0_i32 : i32, i32
  }
}

</mosaic_0001>

<llo_original>
// kernel: tpu_custom_call.1
$region0: #{tpu_custom_call.1}
  #allocation0 [shape = 'u32[]', space=smem, size = 0x4, offset = 0x4, fixed_abs, tag = 'smem constant byte address 0x4 - core index']
  #allocation1 [shape = 'u32[144,128]{1,0:T(1,128)}', space=vmem, size = 0x12000, scoped, tag = 'internal scratch']
  %s0 = inlined_call_operand.vmem [shape: f32[1,128,32], index: 0, kind: input, shape index: {}]
  %s1 = inlined_call_operand.vmem [shape: f32[1,128,32], index: 1, kind: input, shape index: {}]
  %s2 = inlined_call_operand.hbm [shape: f32[1,128], index: 2, kind: output, shape index: {}]
  %s3 = sld [smem:[#allocation0]]
  $region18: #{tpu_custom_call.1} parent=0
    _
  %s5 = ssub.s32 1, %s3
  %s6 = scalar_select 0, %s5, %s3
  $region1: #{tpu_custom_call.1} parent=0
    #allocation2 [shape = 'u8[512]{0}', space=vmem, size = 0x400, scoped, tag = 'output window, operand 0, single buffered']
    #allocation3 [shape = 's32[1]{0}', space=sflag, size = 0x4, scoped, tag = 'scoped memory for tpu_custom_call.1']
    %7 = vsyncpa [#allocation3], 0
    // Predicated region
    $region2: #{tpu_custom_call.1} parent=1 // pred_check
      _
    $region3: #{tpu_custom_call.1} parent=1 // pred_check_branch
      %9 = sbr.rel (0) target = $region5
    $region4: #{tpu_custom_call.1} parent=1 // pred_region
      _
    $region5: #{tpu_custom_call.1} parent=1 // pred_fallthru
      _
    // Predicated region
    $region6: #{tpu_custom_call.1} parent=1 // pred_check
      _
    $region7: #{tpu_custom_call.1} parent=1 // pred_check_branch
      %11 = sbr.rel (0) target = $region9
    $region8: #{tpu_custom_call.1} parent=1 // pred_region
      _
    $region9: #{tpu_custom_call.1} parent=1 // pred_fallthru
      _
    %v12 = vld [vmem:[%s0] sm:$0xff]
    %v13 = vld [vmem:[%s0 + $0x8] sm:$0xff]
    %v14 = vld [vmem:[%s0 + $0x10] sm:$0xff]
    %v15 = vld [vmem:[%s0 + $0x18] sm:$0xff]
    %v16 = vld [vmem:[%s0 + $0x20] sm:$0xff]
    %v17 = vld [vmem:[%s0 + $0x28] sm:$0xff]
    %v18 = vld [vmem:[%s0 + $0x30] sm:$0xff]
    %v19 = vld [vmem:[%s0 + $0x38] sm:$0xff]
    %v20 = vld [vmem:[%s0 + $0x40] sm:$0xff]
    %v21 = vld [vmem:[%s0 + $0x48] sm:$0xff]
    %v22 = vld [vmem:[%s0 + $0x50] sm:$0xff]
    %v23 = vld [vmem:[%s0 + $0x58] sm:$0xff]
    %v24 = vld [vmem:[%s0 + $0x60] sm:$0xff]
    %v25 = vld [vmem:[%s0 + $0x68] sm:$0xff]
    %v26 = vld [vmem:[%s0 + $0x70] sm:$0xff]
    %v27 = vld [vmem:[%s0 + $0x78] sm:$0xff]
    %v28 = vld [vmem:[%s1] sm:$0xff]
    %v29 = vld [vmem:[%s1 + $0x8] sm:$0xff]
    %v30 = vld [vmem:[%s1 + $0x10] sm:$0xff]
    %v31 = vld [vmem:[%s1 + $0x18] sm:$0xff]
    %v32 = vld [vmem:[%s1 + $0x20] sm:$0xff]
    %v33 = vld [vmem:[%s1 + $0x28] sm:$0xff]
    %v34 = vld [vmem:[%s1 + $0x30] sm:$0xff]
    %v35 = vld [vmem:[%s1 + $0x38] sm:$0xff]
    %v36 = vld [vmem:[%s1 + $0x40] sm:$0xff]
    %v37 = vld [vmem:[%s1 + $0x48] sm:$0xff]
    %v38 = vld [vmem:[%s1 + $0x50] sm:$0xff]
    %v39 = vld [vmem:[%s1 + $0x58] sm:$0xff]
    %v40 = vld [vmem:[%s1 + $0x60] sm:$0xff]
    %v41 = vld [vmem:[%s1 + $0x68] sm:$0xff]
    %v42 = vld [vmem:[%s1 + $0x70] sm:$0xff]
    %v43 = vld [vmem:[%s1 + $0x78] sm:$0xff]
    %vm44 = vcmask 261120
    %v45 = vsel %vm44, %v12, -inf
    %46 = vmax.xlane.f32.xlu0 %v45
    %v47 = vpop.xlane.xlu0 %46
    %v48 = vsel %vm44, %v13, -inf
    %49 = vmax.xlane.f32.xlu0 %v48
    %v50 = vpop.xlane.xlu0 %49
    %v51 = vsel %vm44, %v14, -inf
    %52 = vmax.xlane.f32.xlu0 %v51
    %v53 = vpop.xlane.xlu0 %52
    %v54 = vsel %vm44, %v15, -inf
    %55 = vmax.xlane.f32.xlu0 %v54
    %v56 = vpop.xlane.xlu0 %55
    %v57 = vsel %vm44, %v16, -inf
    %58 = vmax.xlane.f32.xlu0 %v57
    %v59 = vpop.xlane.xlu0 %58
    %v60 = vsel %vm44, %v17, -inf
    %61 = vmax.xlane.f32.xlu0 %v60
    %v62 = vpop.xlane.xlu0 %61
    %v63 = vsel %vm44, %v18, -inf
    %64 = vmax.xlane.f32.xlu0 %v63
    %v65 = vpop.xlane.xlu0 %64
    %v66 = vsel %vm44, %v19, -inf
    %67 = vmax.xlane.f32.xlu0 %v66
    %v68 = vpop.xlane.xlu0 %67
    %v69 = vsel %vm44, %v20, -inf
    %70 = vmax.xlane.f32.xlu0 %v69
    %v71 = vpop.xlane.xlu0 %70
    %v72 = vsel %vm44, %v21, -inf
    %73 = vmax.xlane.f32.xlu0 %v72
    %v74 = vpop.xlane.xlu0 %73
    %v75 = vsel %vm44, %v22, -inf
    %76 = vmax.xlane.f32.xlu0 %v75
    %v77 = vpop.xlane.xlu0 %76
    %v78 = vsel %vm44, %v23, -inf
    %79 = vmax.xlane.f32.xlu0 %v78
    %v80 = vpop.xlane.xlu0 %79
    %v81 = vsel %vm44, %v24, -inf
    %82 = vmax.xlane.f32.xlu0 %v81
    %v83 = vpop.xlane.xlu0 %82
    %v84 = vsel %vm44, %v25, -inf
    %85 = vmax.xlane.f32.xlu0 %v84
    %v86 = vpop.xlane.xlu0 %85
    %v87 = vsel %vm44, %v26, -inf
    %88 = vmax.xlane.f32.xlu0 %v87
    %v89 = vpop.xlane.xlu0 %88
    %v90 = vsel %vm44, %v27, -inf
    %91 = vmax.xlane.f32.xlu0 %v90
    %v92 = vpop.xlane.xlu0 %91
    %v93 = vsub.f32 %v12, %v47
    %v94 = vsub.f32 %v13, %v50
    %v95 = vsub.f32 %v14, %v53
    %v96 = vsub.f32 %v15, %v56
    %v97 = vsub.f32 %v16, %v59
    %v98 = vsub.f32 %v17, %v62
    %v99 = vsub.f32 %v18, %v65
    %v100 = vsub.f32 %v19, %v68
    %v101 = vsub.f32 %v20, %v71
    %v102 = vsub.f32 %v21, %v74
    %v103 = vsub.f32 %v22, %v77
    %v104 = vsub.f32 %v23, %v80
    %v105 = vsub.f32 %v24, %v83
    %v106 = vsub.f32 %v25, %v86
    %v107 = vsub.f32 %v26, %v89
    %v108 = vsub.f32 %v27, %v92
    %v109 = vmul.f32 %v93, 1.442695
    %v110 = vpow.pop %v109
    %v111 = vmul.f32 %v94, 1.442695
    %v112 = vpow.pop %v111
    %v113 = vmul.f32 %v95, 1.442695
    %v114 = vpow.pop %v113
    %v115 = vmul.f32 %v96, 1.442695
    %v116 = vpow.pop %v115
    %v117 = vmul.f32 %v97, 1.442695
    %v118 = vpow.pop %v117
    %v119 = vmul.f32 %v98, 1.442695
    %v120 = vpow.pop %v119
    %v121 = vmul.f32 %v99, 1.442695
    %v122 = vpow.pop %v121
    %v123 = vmul.f32 %v100, 1.442695
    %v124 = vpow.pop %v123
    %v125 = vmul.f32 %v101, 1.442695
    %v126 = vpow.pop %v125
    %v127 = vmul.f32 %v102, 1.442695
    %v128 = vpow.pop %v127
    %v129 = vmul.f32 %v103, 1.442695
    %v130 = vpow.pop %v129
    %v131 = vmul.f32 %v104, 1.442695
    %v132 = vpow.pop %v131
    %v133 = vmul.f32 %v105, 1.442695
    %v134 = vpow.pop %v133
    %v135 = vmul.f32 %v106, 1.442695
    %v136 = vpow.pop %v135
    %v137 = vmul.f32 %v107, 1.442695
    %v138 = vpow.pop %v137
    %v139 = vmul.f32 %v108, 1.442695
    %v140 = vpow.pop %v139
    %v141 = vmul.f32 %v110, %v28
    %v142 = vmul.f32 %v112, %v29
    %v143 = vmul.f32 %v114, %v30
    %v144 = vmul.f32 %v116, %v31
    %v145 = vmul.f32 %v118, %v32
    %v146 = vmul.f32 %v120, %v33
    %v147 = vmul.f32 %v122, %v34
    %v148 = vmul.f32 %v124, %v35
    %v149 = vmul.f32 %v126, %v36
    %v150 = vmul.f32 %v128, %v37
    %v151 = vmul.f32 %v130, %v38
    %v152 = vmul.f32 %v132, %v39
    %v153 = vmul.f32 %v134, %v40
    %v154 = vmul.f32 %v136, %v41
    %v155 = vmul.f32 %v138, %v42
    %v156 = vmul.f32 %v140, %v43
    %v157 = vsel %vm44, %v141, 0.0
    %158 = vadd.xlane.f32.xlu0 %v157
    %v159 = vpop.xlane.xlu0 %158
    %v160 = vsel %vm44, %v142, 0.0
    %161 = vadd.xlane.f32.xlu0 %v160
    %v162 = vpop.xlane.xlu0 %161
    %v163 = vsel %vm44, %v143, 0.0
    %164 = vadd.xlane.f32.xlu0 %v163
    %v165 = vpop.xlane.xlu0 %164
    %v166 = vsel %vm44, %v144, 0.0
    %167 = vadd.xlane.f32.xlu0 %v166
    %v168 = vpop.xlane.xlu0 %167
    %v169 = vsel %vm44, %v145, 0.0
    %170 = vadd.xlane.f32.xlu0 %v169
    %v171 = vpop.xlane.xlu0 %170
    %v172 = vsel %vm44, %v146, 0.0
    %173 = vadd.xlane.f32.xlu0 %v172
    %v174 = vpop.xlane.xlu0 %173
    %v175 = vsel %vm44, %v147, 0.0
    %176 = vadd.xlane.f32.xlu0 %v175
    %v177 = vpop.xlane.xlu0 %176
    %v178 = vsel %vm44, %v148, 0.0
    %179 = vadd.xlane.f32.xlu0 %v178
    %v180 = vpop.xlane.xlu0 %179
    %v181 = vsel %vm44, %v149, 0.0
    %182 = vadd.xlane.f32.xlu0 %v181
    %v183 = vpop.xlane.xlu0 %182
    %v184 = vsel %vm44, %v150, 0.0
    %185 = vadd.xlane.f32.xlu0 %v184
    %v186 = vpop.xlane.xlu0 %185
    %v187 = vsel %vm44, %v151, 0.0
    %188 = vadd.xlane.f32.xlu0 %v187
    %v189 = vpop.xlane.xlu0 %188
    %v190 = vsel %vm44, %v152, 0.0
    %191 = vadd.xlane.f32.xlu0 %v190
    %v192 = vpop.xlane.xlu0 %191
    %v193 = vsel %vm44, %v153, 0.0
    %194 = vadd.xlane.f32.xlu0 %v193
    %v195 = vpop.xlane.xlu0 %194
    %v196 = vsel %vm44, %v154, 0.0
    %197 = vadd.xlane.f32.xlu0 %v196
    %v198 = vpop.xlane.xlu0 %197
    %v199 = vsel %vm44, %v155, 0.0
    %200 = vadd.xlane.f32.xlu0 %v199
    %v201 = vpop.xlane.xlu0 %200
    %v202 = vsel %vm44, %v156, 0.0
    %203 = vadd.xlane.f32.xlu0 %v202
    %v204 = vpop.xlane.xlu0 %203
    %v205 = vsel %vm44, %v110, 0.0
    %206 = vadd.xlane.f32.xlu0 %v205
    %v207 = vpop.xlane.xlu0 %206
    %v208 = vsel %vm44, %v112, 0.0
    %209 = vadd.xlane.f32.xlu0 %v208
    %v210 = vpop.xlane.xlu0 %209
    %v211 = vsel %vm44, %v114, 0.0
    %212 = vadd.xlane.f32.xlu0 %v211
    %v213 = vpop.xlane.xlu0 %212
    %v214 = vsel %vm44, %v116, 0.0
    %215 = vadd.xlane.f32.xlu0 %v214
    %v216 = vpop.xlane.xlu0 %215
    %v217 = vsel %vm44, %v118, 0.0
    %218 = vadd.xlane.f32.xlu0 %v217
    %v219 = vpop.xlane.xlu0 %218
    %v220 = vsel %vm44, %v120, 0.0
    %221 = vadd.xlane.f32.xlu0 %v220
    %v222 = vpop.xlane.xlu0 %221
    %v223 = vsel %vm44, %v122, 0.0
    %224 = vadd.xlane.f32.xlu0 %v223
    %v225 = vpop.xlane.xlu0 %224
    %v226 = vsel %vm44, %v124, 0.0
    %227 = vadd.xlane.f32.xlu0 %v226
    %v228 = vpop.xlane.xlu0 %227
    %v229 = vsel %vm44, %v126, 0.0
    %230 = vadd.xlane.f32.xlu0 %v229
    %v231 = vpop.xlane.xlu0 %230
    %v232 = vsel %vm44, %v128, 0.0
    %233 = vadd.xlane.f32.xlu0 %v232
    %v234 = vpop.xlane.xlu0 %233
    %v235 = vsel %vm44, %v130, 0.0
    %236 = vadd.xlane.f32.xlu0 %v235
    %v237 = vpop.xlane.xlu0 %236
    %v238 = vsel %vm44, %v132, 0.0
    %239 = vadd.xlane.f32.xlu0 %v238
    %v240 = vpop.xlane.xlu0 %239
    %v241 = vsel %vm44, %v134, 0.0
    %242 = vadd.xlane.f32.xlu0 %v241
    %v243 = vpop.xlane.xlu0 %242
    %v244 = vsel %vm44, %v136, 0.0
    %245 = vadd.xlane.f32.xlu0 %v244
    %v246 = vpop.xlane.xlu0 %245
    %v247 = vsel %vm44, %v138, 0.0
    %248 = vadd.xlane.f32.xlu0 %v247
    %v249 = vpop.xlane.xlu0 %248
    %v250 = vsel %vm44, %v140, 0.0
    %251 = vadd.xlane.f32.xlu0 %v250
    %v252 = vpop.xlane.xlu0 %251
    %v253 = vrcp.pop %v207
    %v254 = vrcp.pop %v210
    %v255 = vrcp.pop %v213
    %v256 = vrcp.pop %v216
    %v257 = vrcp.pop %v219
    %v258 = vrcp.pop %v222
    %v259 = vrcp.pop %v225
    %v260 = vrcp.pop %v228
    %v261 = vrcp.pop %v231
    %v262 = vrcp.pop %v234
    %v263 = vrcp.pop %v237
    %v264 = vrcp.pop %v240
    %v265 = vrcp.pop %v243
    %v266 = vrcp.pop %v246
    %v267 = vrcp.pop %v249
    %v268 = vrcp.pop %v252
    %v269 = vmul.f32 %v207, %v253
    %v270 = vmul.f32 %v210, %v254
    %v271 = vmul.f32 %v213, %v255
    %v272 = vmul.f32 %v216, %v256
    %v273 = vmul.f32 %v219, %v257
    %v274 = vmul.f32 %v222, %v258
    %v275 = vmul.f32 %v225, %v259
    %v276 = vmul.f32 %v228, %v260
    %v277 = vmul.f32 %v231, %v261
    %v278 = vmul.f32 %v234, %v262
    %v279 = vmul.f32 %v237, %v263
    %v280 = vmul.f32 %v240, %v264
    %v281 = vmul.f32 %v243, %v265
    %v282 = vmul.f32 %v246, %v266
    %v283 = vmul.f32 %v249, %v267
    %v284 = vmul.f32 %v252, %v268
    %v285 = vsub.f32 2.0, %v269
    %v286 = vsub.f32 2.0, %v270
    %v287 = vsub.f32 2.0, %v271
    %v288 = vsub.f32 2.0, %v272
    %v289 = vsub.f32 2.0, %v273
    %v290 = vsub.f32 2.0, %v274
    %v291 = vsub.f32 2.0, %v275
    %v292 = vsub.f32 2.0, %v276
    %v293 = vsub.f32 2.0, %v277
    %v294 = vsub.f32 2.0, %v278
    %v295 = vsub.f32 2.0, %v279
    %v296 = vsub.f32 2.0, %v280
    %v297 = vsub.f32 2.0, %v281
    %v298 = vsub.f32 2.0, %v282
    %v299 = vsub.f32 2.0, %v283
    %v300 = vsub.f32 2.0, %v284
    %v301 = vmul.f32 %v253, %v285
    %v302 = vmul.f32 %v254, %v286
    %v303 = vmul.f32 %v255, %v287
    %v304 = vmul.f32 %v256, %v288
    %v305 = vmul.f32 %v257, %v289
    %v306 = vmul.f32 %v258, %v290
    %v307 = vmul.f32 %v259, %v291
    %v308 = vmul.f32 %v260, %v292
    %v309 = vmul.f32 %v261, %v293
    %v310 = vmul.f32 %v262, %v294
    %v311 = vmul.f32 %v263, %v295
    %v312 = vmul.f32 %v264, %v296
    %v313 = vmul.f32 %v265, %v297
    %v314 = vmul.f32 %v266, %v298
    %v315 = vmul.f32 %v267, %v299
    %v316 = vmul.f32 %v268, %v300
    %v317 = vmul.f32 %v159, %v301
    %v318 = vmul.f32 %v162, %v302
    %v319 = vmul.f32 %v165, %v303
    %v320 = vmul.f32 %v168, %v304
    %v321 = vmul.f32 %v171, %v305
    %v322 = vmul.f32 %v174, %v306
    %v323 = vmul.f32 %v177, %v307
    %v324 = vmul.f32 %v180, %v308
    %v325 = vmul.f32 %v183, %v309
    %v326 = vmul.f32 %v186, %v310
    %v327 = vmul.f32 %v189, %v311
    %v328 = vmul.f32 %v192, %v312
    %v329 = vmul.f32 %v195, %v313
    %v330 = vmul.f32 %v198, %v314
    %v331 = vmul.f32 %v201, %v315
    %v332 = vmul.f32 %v204, %v316
    %v349 = vlaneseq
    %v350 = vand.u32 %v349, 127
    %v351 = vlaneseq
    %v352 = vshrl.u32 %v351, 7
    %v353 = vsub.s32 %v350, %v352
    %v354 = vrot.slane %v317, %v353
    %v355 = vadd.s32 %v350, 4294967288
    %v356 = vlaneseq
    %v357 = vshrl.u32 %v356, 7
    %v358 = vsub.s32 %v355, %v357
    %v359 = vrot.slane %v318, %v358
    %vm360 = vcmask 130112
    %v361 = vsel %vm360, %v359, %v354
    %v362 = vadd.s32 %v350, 4294967280
    %v363 = vlaneseq
    %v364 = vshrl.u32 %v363, 7
    %v365 = vsub.s32 %v362, %v364
    %v366 = vrot.slane %v319, %v365
    %vm367 = vcmask 195712
    %v368 = vsel %vm367, %v366, %v361
    %v369 = vadd.s32 %v350, 4294967272
    %v370 = vlaneseq
    %v371 = vshrl.u32 %v370, 7
    %v372 = vsub.s32 %v369, %v371
    %v373 = vrot.slane %v320, %v372
    %vm374 = vcmask 261312
    %v375 = vsel %vm374, %v373, %v368
    %v376 = vadd.s32 %v350, 4294967264
    %v377 = vlaneseq
    %v378 = vshrl.u32 %v377, 7
    %v379 = vsub.s32 %v376, %v378
    %v380 = vrot.slane %v321, %v379
    %vm381 = vcmask 326912
    %v382 = vsel %vm381, %v380, %v375
    %v383 = vadd.s32 %v350, 4294967256
    %v384 = vlaneseq
    %v385 = vshrl.u32 %v384, 7
    %v386 = vsub.s32 %v383, %v385
    %v387 = vrot.slane %v322, %v386
    %vm388 = vcmask 392512
    %v389 = vsel %vm388, %v387, %v382
    %v390 = vadd.s32 %v350, 4294967248
    %v391 = vlaneseq
    %v392 = vshrl.u32 %v391, 7
    %v393 = vsub.s32 %v390, %v392
    %v394 = vrot.slane %v323, %v393
    %vm395 = vcmask 458112
    %v396 = vsel %vm395, %v394, %v389
    %v397 = vadd.s32 %v350, 4294967240
    %v398 = vlaneseq
    %v399 = vshrl.u32 %v398, 7
    %v400 = vsub.s32 %v397, %v399
    %v401 = vrot.slane %v324, %v400
    %vm402 = vcmask 523712
    %v403 = vsel %vm402, %v401, %v396
    %v404 = vadd.s32 %v350, 4294967232
    %v405 = vlaneseq
    %v406 = vshrl.u32 %v405, 7
    %v407 = vsub.s32 %v404, %v406
    %v408 = vrot.slane %v325, %v407
    %vm409 = vcmask 589312
    %v410 = vsel %vm409, %v408, %v403
    %v411 = vadd.s32 %v350, 4294967224
    %v412 = vlaneseq
    %v413 = vshrl.u32 %v412, 7
    %v414 = vsub.s32 %v411, %v413
    %v415 = vrot.slane %v326, %v414
    %vm416 = vcmask 654912
    %v417 = vsel %vm416, %v415, %v410
    %v418 = vadd.s32 %v350, 4294967216
    %v419 = vlaneseq
    %v420 = vshrl.u32 %v419, 7
    %v421 = vsub.s32 %v418, %v420
    %v422 = vrot.slane %v327, %v421
    %vm423 = vcmask 720512
    %v424 = vsel %vm423, %v422, %v417
    %v425 = vadd.s32 %v350, 4294967208
    %v426 = vlaneseq
    %v427 = vshrl.u32 %v426, 7
    %v428 = vsub.s32 %v425, %v427
    %v429 = vrot.slane %v328, %v428
    %vm430 = vcmask 786112
    %v431 = vsel %vm430, %v429, %v424
    %v432 = vadd.s32 %v350, 4294967200
    %v433 = vlaneseq
    %v434 = vshrl.u32 %v433, 7
    %v435 = vsub.s32 %v432, %v434
    %v436 = vrot.slane %v329, %v435
    %vm437 = vcmask 851712
    %v438 = vsel %vm437, %v436, %v431
    %v439 = vadd.s32 %v350, 4294967192
    %v440 = vlaneseq
    %v441 = vshrl.u32 %v440, 7
    %v442 = vsub.s32 %v439, %v441
    %v443 = vrot.slane %v330, %v442
    %vm444 = vcmask 917312
    %v445 = vsel %vm444, %v443, %v438
    %v446 = vadd.s32 %v350, 4294967184
    %v447 = vlaneseq
    %v448 = vshrl.u32 %v447, 7
    %v449 = vsub.s32 %v446, %v448
    %v450 = vrot.slane %v331, %v449
    %vm451 = vcmask 982912
    %v452 = vsel %vm451, %v450, %v445
    %v453 = vadd.s32 %v350, 4294967176
    %v454 = vlaneseq
    %v455 = vshrl.u32 %v454, 7
    %v456 = vsub.s32 %v453, %v455
    %v457 = vrot.slane %v332, %v456
    %vm458 = vcmask 1048512
    %v459 = vsel %vm458, %v457, %v452
    %461 = vst [vmem:[#allocation2] sm:$0x1] %v459
    // Predicated region
    $region10: #{tpu_custom_call.1} parent=1 // pred_check
      _
    $region11: #{tpu_custom_call.1} parent=1 // pred_check_branch
      %463 = sbr.rel (0) target = $region13
    $region12: #{tpu_custom_call.1} parent=1 // pred_region
      %s465 = ssub.s32 16, 16
      %466 = vsyncadd [#allocation3], %s465
      %s468 = sshll.u32 [#allocation2], 4
      %s469 = int_to_ptr.vmem [resolvable:$true] %s468
      %471 = dma.vmem_to_hbm [thread:$0]  %s469, 16, %s2, [#allocation3]
    $region13: #{tpu_custom_call.1} parent=1 // pred_fallthru
      _
    // Predicated region
    $region14: #{tpu_custom_call.1} parent=1 // pred_check
      _
    $region15: #{tpu_custom_call.1} parent=1 // pred_check_branch
      %473 = sbr.rel (0) target = $region17
    $region16: #{tpu_custom_call.1} parent=1 // pred_region
      %474 = dma.done [#allocation3], 16
    $region17: #{tpu_custom_call.1} parent=1 // pred_fallthru
      _
    %475 = vsyncpa [#allocation3], 1

</llo_original>
